<compile_context>
chip_gen: v7x
topology: tpu7x:2x2x1
jax: 0.10.0
libtpu: 0.0.40
codegen_flags: <defaults>
</compile_context>

<pallas_src>
import math

import jax
import jax.numpy as jnp
from jax.experimental import pallas as pl
from jax.experimental.pallas import tpu as pltpu

NEG_SLOPE = 0.01  # torch.nn.LeakyReLU default


def _leaky_relu(x):
    # For 0 < slope < 1, max(x, a*x) == LeakyReLU(x); cheaper than where().
    return jnp.maximum(x, NEG_SLOPE * x)


def _round_up(n, m):
    return ((n + m - 1) // m) * m


def _pack_group(input_dim):
    """Batch rows packed per VMEM row so the packed width is lane-dense
    (a multiple of the 128-lane vreg width)."""
    return math.lcm(128, input_dim) // input_dim


# ----------------------------------------------------------------------------
# Kernel
# ----------------------------------------------------------------------------
def autoencoder_kernel(x_ref,
                       w1_ref, b1_ref,
                       w2_ref, b2_ref,
                       w3_ref, b3_ref,
                       w4_ref, b4_ref,
                       o_ref):
    # x_ref: (tile_rows, G*input_dim) -- G batch rows packed per VMEM row,
    # fully lane-dense.  Weights are block-diagonal kron(I_G, W^T) and biases
    # are tiled G times, so each original batch row sees exactly x @ W^T + b.
    x = x_ref[...]
    h = _leaky_relu(jnp.dot(x, w1_ref[...], preferred_element_type=jnp.float32)
                    + b1_ref[...])
    c = _leaky_relu(jnp.dot(h, w2_ref[...], preferred_element_type=jnp.float32)
                    + b2_ref[...])
    d = _leaky_relu(jnp.dot(c, w3_ref[...], preferred_element_type=jnp.float32)
                    + b3_ref[...])
    r = _leaky_relu(jnp.dot(d, w4_ref[...], preferred_element_type=jnp.float32)
                    + b4_ref[...])
    o_ref[...] = r.astype(o_ref.dtype)


# ----------------------------------------------------------------------------
# Parameter packing (done once, outside the hot path)
# ----------------------------------------------------------------------------
def pack_params(params, group):
    """Fold PyTorch-layout W:(out,in), b:(out,1) into the packed-lane layout:
       W_big = kron(I_G, W^T)  shape (G*in, G*out),
       b_big = tile(b^T, G)    shape (1, G*out)."""
    eye = jnp.eye(group, dtype=jnp.float32)

    def fold(w, b):
        w_big = jnp.kron(eye, w.T.astype(jnp.float32))
        b_big = jnp.tile(b.reshape(1, -1).astype(jnp.float32), (1, group))
        return w_big, b_big

    packed = {}
    for i in (1, 2, 3, 4):
        packed[f"w{i}"], packed[f"b{i}"] = fold(params[f"w{i}"], params[f"b{i}"])
    return packed


# ----------------------------------------------------------------------------
# Wrapper
# ----------------------------------------------------------------------------
def autoencoder_forward(x, packed, *, group, tile_bytes_max=2 * 1024 * 1024):
    """x: [B, input_dim] float32 -> reconstruction [B, input_dim]."""
    B, input_dim = x.shape
    width = group * input_dim  # multiple of 128 (lane-dense)

    # Pad the batch only if it is not a multiple of `group` (rare for ML batch
    # sizes; multiples of `group` incur ZERO extra HBM passes end-to-end).
    b_pad = _round_up(B, group)
    if b_pad != B:
        x = jnp.pad(x, ((0, b_pad - B), (0, 0)))
    rows = b_pad // group
    x_flat = x.reshape(rows, width)  # free: contiguous row-major reshape

    # Row-tile selection:
    #   * multiple of 8 (sublanes),
    #   * <= ~tile_bytes_max per buffer (VMEM budget: 2x double-buffered
    #     in + out + a few intermediates stays well under 32 MiB scoped VMEM),
    #   * small enough to keep >= 8 grid steps when the batch allows it
    #     (megacore sharding of the "parallel" axis on v7x).
    if rows <= 8:
        tile_rows = rows  # single full-extent block
    else:
        bytes_per_row = width * x.dtype.itemsize
        cap = max(8, (tile_bytes_max // bytes_per_row) // 8 * 8)
        tile_rows = max(8, min(cap, _round_up(pl.cdiv(rows, 8), 8)))
    grid = (pl.cdiv(rows, tile_rows),)  # last block may be partial: OOB reads
    #                                     are row-local garbage, OOB writes dropped.

    def const_spec(arr):
        # Whole (tiny) weight/bias array, same block every step -> VMEM
        # resident, DMA'd once.
        return pl.BlockSpec(arr.shape, lambda i: (0,) * arr.ndim)

    out_flat = pl.pallas_call(
        autoencoder_kernel,
        out_shape=jax.ShapeDtypeStruct((rows, width), x.dtype),
        grid=grid,
        in_specs=[
            pl.BlockSpec((tile_rows, width), lambda i: (i, 0)),
            const_spec(packed["w1"]), const_spec(packed["b1"]),
            const_spec(packed["w2"]), const_spec(packed["b2"]),
            const_spec(packed["w3"]), const_spec(packed["b3"]),
            const_spec(packed["w4"]), const_spec(packed["b4"]),
        ],
        out_specs=pl.BlockSpec((tile_rows, width), lambda i: (i, 0)),
        compiler_params=pltpu.CompilerParams(
            dimension_semantics=("parallel",),
            vmem_limit_bytes=32 * 1024 * 1024),
    )(x_flat, packed["w1"], packed["b1"], packed["w2"], packed["b2"],
      packed["w3"], packed["b3"], packed["w4"], packed["b4"])

    out = out_flat.reshape(b_pad, input_dim)  # free reshape back
    return out[:B] if b_pad != B else out


# ----------------------------------------------------------------------------
# Init + pure-JAX reference (PyTorch convention)
# ----------------------------------------------------------------------------
def init_params(key, input_dim, encoding_dim):
    """nn.Linear-style init, PyTorch layout: W (fan_out, fan_in), b (fan_out, 1)."""
    def linear(key, fan_in, fan_out):
        kw, kb = jax.random.split(key)
        bound = 1.0 / jnp.sqrt(jnp.float32(fan_in))
        w = jax.random.uniform(kw, (fan_out, fan_in), jnp.float32, -bound, bound)
        b = jax.random.uniform(kb, (fan_out, 1), jnp.float32, -bound, bound)
        return w, b

    k1, k2, k3, k4 = jax.random.split(key, 4)
    w1, b1 = linear(k1, input_dim, 9)
    w2, b2 = linear(k2, 9, encoding_dim)
    w3, b3 = linear(k3, encoding_dim, 9)
    w4, b4 = linear(k4, 9, input_dim)
    return {"w1": w1, "b1": b1, "w2": w2, "b2": b2,
            "w3": w3, "b3": b3, "w4": w4, "b4": b4}


def reference_forward(x, p):
    h = _leaky_relu(x @ p["w1"].T + p["b1"].T)
    c = _leaky_relu(h @ p["w2"].T + p["b2"].T)
    d = _leaky_relu(c @ p["w3"].T + p["b3"].T)
    return _leaky_relu(d @ p["w4"].T + p["b4"].T)


if __name__ == "__main__":
    input_dim, encoding_dim = 16, 4
    key = jax.random.PRNGKey(0)
    kp, k1, k2, k3 = jax.random.split(key, 4)

    params = init_params(kp, input_dim, encoding_dim)
    group = _pack_group(input_dim)          # 8 rows per VMEM row for D=16
    packed = pack_params(params, group)

    # 1) tiny batch: single full-extent block (rows = 1).
    x1 = jax.random.normal(k1, (8, input_dim), dtype=jnp.float32)
    o1 = jax.block_until_ready(autoencoder_forward(x1, packed, group=group))
    assert o1.shape == (8, input_dim)
    assert jnp.allclose(o1, reference_forward(x1, params), atol=1e-5, rtol=1e-5)

    # 2) ragged batch: small pad path + multi-step grid + partial last block.
    x2 = jax.random.normal(k2, (300, input_dim), dtype=jnp.float32)
    o2 = jax.block_until_ready(autoencoder_forward(x2, packed, group=group))
    assert o2.shape == (300, input_dim)
    assert jnp.allclose(o2, reference_forward(x2, params), atol=1e-5, rtol=1e-5)

    # 3) group-aligned batch: zero-extra-HBM-pass path, >= 8 grid steps.
    x3 = jax.random.normal(k3, (1024, input_dim), dtype=jnp.float32)
    o3 = jax.block_until_ready(autoencoder_forward(x3, packed, group=group))
    assert o3.shape == (1024, input_dim)
    assert jnp.allclose(o3, reference_forward(x3, params), atol=1e-5, rtol=1e-5)

    print("KERNEL_OK")
</pallas_src>

<mosaic_0001>
module attributes {stable_mosaic.version = 11 : i64} {
  func.func @autoencoder_kernel(%arg0: i32, %arg1: memref<1x128xf32, #tpu.memory_space<vmem>>, %arg2: memref<128x72xf32, #tpu.memory_space<vmem>>, %arg3: memref<1x72xf32, #tpu.memory_space<vmem>>, %arg4: memref<72x32xf32, #tpu.memory_space<vmem>>, %arg5: memref<1x32xf32, #tpu.memory_space<vmem>>, %arg6: memref<32x72xf32, #tpu.memory_space<vmem>>, %arg7: memref<1x72xf32, #tpu.memory_space<vmem>>, %arg8: memref<72x128xf32, #tpu.memory_space<vmem>>, %arg9: memref<1x128xf32, #tpu.memory_space<vmem>>, %arg10: memref<1x128xf32, #tpu.memory_space<vmem>>) attributes {dimension_semantics = [#tpu.dimension_semantics<parallel>], iteration_bounds = array<i64: 1>, scalar_prefetch = 0 : i64, scratch_operands = 0 : i64, tpu.core_type = #tpu.core_type<tc>, window_params = [{transform_indices = @transform_0, window_bounds = array<i64: 1, 128>}, {pipeline_mode = #tpu.pipeline_mode<synchronous>, transform_indices = @transform_1, window_bounds = array<i64: 128, 72>}, {pipeline_mode = #tpu.pipeline_mode<synchronous>, transform_indices = @transform_2, window_bounds = array<i64: 1, 72>}, {pipeline_mode = #tpu.pipeline_mode<synchronous>, transform_indices = @transform_3, window_bounds = array<i64: 72, 32>}, {pipeline_mode = #tpu.pipeline_mode<synchronous>, transform_indices = @transform_4, window_bounds = array<i64: 1, 32>}, {pipeline_mode = #tpu.pipeline_mode<synchronous>, transform_indices = @transform_5, window_bounds = array<i64: 32, 72>}, {pipeline_mode = #tpu.pipeline_mode<synchronous>, transform_indices = @transform_6, window_bounds = array<i64: 1, 72>}, {pipeline_mode = #tpu.pipeline_mode<synchronous>, transform_indices = @transform_7, window_bounds = array<i64: 72, 128>}, {pipeline_mode = #tpu.pipeline_mode<synchronous>, transform_indices = @transform_8, window_bounds = array<i64: 1, 128>}, {transform_indices = @transform_9, window_bounds = array<i64: 1, 128>}]} {
    %c0 = arith.constant 0 : index
    %c0_0 = arith.constant 0 : index
    %0 = vector.load %arg1[%c0, %c0_0] : memref<1x128xf32, #tpu.memory_space<vmem>>, vector<1x128xf32>
    %c0_1 = arith.constant 0 : index
    %c0_2 = arith.constant 0 : index
    %1 = vector.load %arg2[%c0_1, %c0_2] : memref<128x72xf32, #tpu.memory_space<vmem>>, vector<128x72xf32>
    %cst = arith.constant dense<0.000000e+00> : vector<1x72xf32>
    %2 = tpu.matmul %0, %1, %cst {dimension_numbers = #tpu.dot_dimension_numbers<[1], [0], [0], [1], [0, 0, 1, 1], [], []>} : vector<1x128xf32>, vector<128x72xf32>, vector<1x72xf32> -> vector<1x72xf32>
    %c0_3 = arith.constant 0 : index
    %c0_4 = arith.constant 0 : index
    %3 = vector.load %arg3[%c0_3, %c0_4] : memref<1x72xf32, #tpu.memory_space<vmem>>, vector<1x72xf32>
    %4 = arith.addf %2, %3 : vector<1x72xf32>
    %cst_5 = arith.constant 0.00999999977 : f32
    %5 = vector.broadcast %cst_5 : f32 to vector<1x72xf32>
    %6 = arith.mulf %5, %4 : vector<1x72xf32>
    %7 = arith.maximumf %4, %6 : vector<1x72xf32>
    %c0_6 = arith.constant 0 : index
    %c0_7 = arith.constant 0 : index
    %8 = vector.load %arg4[%c0_6, %c0_7] : memref<72x32xf32, #tpu.memory_space<vmem>>, vector<72x32xf32>
    %cst_8 = arith.constant dense<0.000000e+00> : vector<1x32xf32>
    %9 = tpu.matmul %7, %8, %cst_8 {dimension_numbers = #tpu.dot_dimension_numbers<[1], [0], [0], [1], [0, 0, 1, 1], [], []>} : vector<1x72xf32>, vector<72x32xf32>, vector<1x32xf32> -> vector<1x32xf32>
    %c0_9 = arith.constant 0 : index
    %c0_10 = arith.constant 0 : index
    %10 = vector.load %arg5[%c0_9, %c0_10] : memref<1x32xf32, #tpu.memory_space<vmem>>, vector<1x32xf32>
    %11 = arith.addf %9, %10 : vector<1x32xf32>
    %cst_11 = arith.constant 0.00999999977 : f32
    %12 = vector.broadcast %cst_11 : f32 to vector<1x32xf32>
    %13 = arith.mulf %12, %11 : vector<1x32xf32>
    %14 = arith.maximumf %11, %13 : vector<1x32xf32>
    %c0_12 = arith.constant 0 : index
    %c0_13 = arith.constant 0 : index
    %15 = vector.load %arg6[%c0_12, %c0_13] : memref<32x72xf32, #tpu.memory_space<vmem>>, vector<32x72xf32>
    %cst_14 = arith.constant dense<0.000000e+00> : vector<1x72xf32>
    %16 = tpu.matmul %14, %15, %cst_14 {dimension_numbers = #tpu.dot_dimension_numbers<[1], [0], [0], [1], [0, 0, 1, 1], [], []>} : vector<1x32xf32>, vector<32x72xf32>, vector<1x72xf32> -> vector<1x72xf32>
    %c0_15 = arith.constant 0 : index
    %c0_16 = arith.constant 0 : index
    %17 = vector.load %arg7[%c0_15, %c0_16] : memref<1x72xf32, #tpu.memory_space<vmem>>, vector<1x72xf32>
    %18 = arith.addf %16, %17 : vector<1x72xf32>
    %cst_17 = arith.constant 0.00999999977 : f32
    %19 = vector.broadcast %cst_17 : f32 to vector<1x72xf32>
    %20 = arith.mulf %19, %18 : vector<1x72xf32>
    %21 = arith.maximumf %18, %20 : vector<1x72xf32>
    %c0_18 = arith.constant 0 : index
    %c0_19 = arith.constant 0 : index
    %22 = vector.load %arg8[%c0_18, %c0_19] : memref<72x128xf32, #tpu.memory_space<vmem>>, vector<72x128xf32>
    %cst_20 = arith.constant dense<0.000000e+00> : vector<1x128xf32>
    %23 = tpu.matmul %21, %22, %cst_20 {dimension_numbers = #tpu.dot_dimension_numbers<[1], [0], [0], [1], [0, 0, 1, 1], [], []>} : vector<1x72xf32>, vector<72x128xf32>, vector<1x128xf32> -> vector<1x128xf32>
    %c0_21 = arith.constant 0 : index
    %c0_22 = arith.constant 0 : index
    %24 = vector.load %arg9[%c0_21, %c0_22] : memref<1x128xf32, #tpu.memory_space<vmem>>, vector<1x128xf32>
    %25 = arith.addf %23, %24 : vector<1x128xf32>
    %cst_23 = arith.constant 0.00999999977 : f32
    %26 = vector.broadcast %cst_23 : f32 to vector<1x128xf32>
    %27 = arith.mulf %26, %25 : vector<1x128xf32>
    %28 = arith.maximumf %25, %27 : vector<1x128xf32>
    %c0_24 = arith.constant 0 : index
    %c0_25 = arith.constant 0 : index
    %29 = vector.load %arg10[%c0_24, %c0_25] : memref<1x128xf32, #tpu.memory_space<vmem>>, vector<1x128xf32>
    tpu.vector_store %arg10[%c0_24, %c0_25], %28 {strides = array<i32>} : memref<1x128xf32, #tpu.memory_space<vmem>>, vector<1x128xf32>,
    return
  }
  func.func @transform_0(%arg0: i32) -> (i32, i32) {
    %c0_i32 = arith.constant 0 : i32
    %c0_i32_0 = arith.constant 0 : i32
    return %arg0, %c0_i32 : i32, i32
  }
  func.func @transform_1(%arg0: i32) -> (i32, i32) {
    %c0_i32 = arith.constant 0 : i32
    %c0_i32_0 = arith.constant 0 : i32
    %c0_i32_1 = arith.constant 0 : i32
    return %c0_i32, %c0_i32_0 : i32, i32
  }
  func.func @transform_2(%arg0: i32) -> (i32, i32) {
    %c0_i32 = arith.constant 0 : i32
    %c0_i32_0 = arith.constant 0 : i32
    %c0_i32_1 = arith.constant 0 : i32
    return %c0_i32, %c0_i32_0 : i32, i32
  }
  func.func @transform_3(%arg0: i32) -> (i32, i32) {
    %c0_i32 = arith.constant 0 : i32
    %c0_i32_0 = arith.constant 0 : i32
    %c0_i32_1 = arith.constant 0 : i32
    return %c0_i32, %c0_i32_0 : i32, i32
  }
  func.func @transform_4(%arg0: i32) -> (i32, i32) {
    %c0_i32 = arith.constant 0 : i32
    %c0_i32_0 = arith.constant 0 : i32
    %c0_i32_1 = arith.constant 0 : i32
    return %c0_i32, %c0_i32_0 : i32, i32
  }
  func.func @transform_5(%arg0: i32) -> (i32, i32) {
    %c0_i32 = arith.constant 0 : i32
    %c0_i32_0 = arith.constant 0 : i32
    %c0_i32_1 = arith.constant 0 : i32
    return %c0_i32, %c0_i32_0 : i32, i32
  }
  func.func @transform_6(%arg0: i32) -> (i32, i32) {
    %c0_i32 = arith.constant 0 : i32
    %c0_i32_0 = arith.constant 0 : i32
    %c0_i32_1 = arith.constant 0 : i32
    return %c0_i32, %c0_i32_0 : i32, i32
  }
  func.func @transform_7(%arg0: i32) -> (i32, i32) {
    %c0_i32 = arith.constant 0 : i32
    %c0_i32_0 = arith.constant 0 : i32
    %c0_i32_1 = arith.constant 0 : i32
    return %c0_i32, %c0_i32_0 : i32, i32
  }
  func.func @transform_8(%arg0: i32) -> (i32, i32) {
    %c0_i32 = arith.constant 0 : i32
    %c0_i32_0 = arith.constant 0 : i32
    %c0_i32_1 = arith.constant 0 : i32
    return %c0_i32, %c0_i32_0 : i32, i32
  }
  func.func @transform_9(%arg0: i32) -> (i32, i32) {
    %c0_i32 = arith.constant 0 : i32
    %c0_i32_0 = arith.constant 0 : i32
    return %arg0, %c0_i32 : i32, i32
  }
}

</mosaic_0001>

<llo_original>
// kernel: tpu_custom_call.1
$region0: #{tpu_custom_call.1}
  #allocation0 [shape = 'u32[]', space=smem, size = 0x4, offset = 0x4, fixed_abs, tag = 'smem constant byte address 0x4 - core index']
  #allocation1 [shape = 'u32[144,128]{1,0:T(1,128)}', space=vmem, size = 0x12000, scoped, tag = 'internal scratch']
  %s0 = inlined_call_operand.vmem [shape: f32[1,128], index: 0, kind: input, shape index: {}]
  %s1 = inlined_call_operand.vmem [shape: f32[128,72], index: 1, kind: input, shape index: {}]
  %s2 = inlined_call_operand.vmem [shape: f32[1,72], index: 2, kind: input, shape index: {}]
  %s3 = inlined_call_operand.vmem [shape: f32[72,32], index: 3, kind: input, shape index: {}]
  %s4 = inlined_call_operand.vmem [shape: f32[1,32], index: 4, kind: input, shape index: {}]
  %s5 = inlined_call_operand.vmem [shape: f32[32,72], index: 5, kind: input, shape index: {}]
  %s6 = inlined_call_operand.vmem [shape: f32[1,72], index: 6, kind: input, shape index: {}]
  %s7 = inlined_call_operand.vmem [shape: f32[72,128], index: 7, kind: input, shape index: {}]
  %s8 = inlined_call_operand.vmem [shape: f32[1,128], index: 8, kind: input, shape index: {}]
  %s9 = inlined_call_operand.hbm [shape: f32[1,128], index: 9, kind: output, shape index: {}]
  %s10 = sld [smem:[#allocation0]]
  $region46: #{tpu_custom_call.1} parent=0
    _
  %s12 = ssub.s32 1, %s10
  %s13 = scalar_select 0, %s12, %s10
  $region1: #{tpu_custom_call.1} parent=0
    #allocation2 [shape = 'u8[512]{0}', space=vmem, size = 0x400, scoped, tag = 'output window, operand 0, single buffered']
    #allocation3 [shape = 's32[1]{0}', space=sflag, size = 0x4, scoped, tag = 'scoped memory for tpu_custom_call.1']
    %14 = vsyncpa [#allocation3], 0
    // Predicated region
    $region2: #{tpu_custom_call.1} parent=1 // pred_check
      _
    $region3: #{tpu_custom_call.1} parent=1 // pred_check_branch
      %16 = sbr.rel (0) target = $region5
    $region4: #{tpu_custom_call.1} parent=1 // pred_region
      _
    $region5: #{tpu_custom_call.1} parent=1 // pred_fallthru
      _
    // Predicated region
    $region6: #{tpu_custom_call.1} parent=1 // pred_check
      _
    $region7: #{tpu_custom_call.1} parent=1 // pred_check_branch
      %18 = sbr.rel (0) target = $region9
    $region8: #{tpu_custom_call.1} parent=1 // pred_region
      _
    $region9: #{tpu_custom_call.1} parent=1 // pred_fallthru
      _
    // Predicated region
    $region10: #{tpu_custom_call.1} parent=1 // pred_check
      _
    $region11: #{tpu_custom_call.1} parent=1 // pred_check_branch
      %20 = sbr.rel (0) target = $region13
    $region12: #{tpu_custom_call.1} parent=1 // pred_region
      _
    $region13: #{tpu_custom_call.1} parent=1 // pred_fallthru
      _
    // Predicated region
    $region14: #{tpu_custom_call.1} parent=1 // pred_check
      _
    $region15: #{tpu_custom_call.1} parent=1 // pred_check_branch
      %22 = sbr.rel (0) target = $region17
    $region16: #{tpu_custom_call.1} parent=1 // pred_region
      _
    $region17: #{tpu_custom_call.1} parent=1 // pred_fallthru
      _
    // Predicated region
    $region18: #{tpu_custom_call.1} parent=1 // pred_check
      _
    $region19: #{tpu_custom_call.1} parent=1 // pred_check_branch
      %24 = sbr.rel (0) target = $region21
    $region20: #{tpu_custom_call.1} parent=1 // pred_region
      _
    $region21: #{tpu_custom_call.1} parent=1 // pred_fallthru
      _
    // Predicated region
    $region22: #{tpu_custom_call.1} parent=1 // pred_check
      _
    $region23: #{tpu_custom_call.1} parent=1 // pred_check_branch
      %26 = sbr.rel (0) target = $region25
    $region24: #{tpu_custom_call.1} parent=1 // pred_region
      _
    $region25: #{tpu_custom_call.1} parent=1 // pred_fallthru
      _
    // Predicated region
    $region26: #{tpu_custom_call.1} parent=1 // pred_check
      _
    $region27: #{tpu_custom_call.1} parent=1 // pred_check_branch
      %28 = sbr.rel (0) target = $region29
    $region28: #{tpu_custom_call.1} parent=1 // pred_region
      _
    $region29: #{tpu_custom_call.1} parent=1 // pred_fallthru
      _
    // Predicated region
    $region30: #{tpu_custom_call.1} parent=1 // pred_check
      _
    $region31: #{tpu_custom_call.1} parent=1 // pred_check_branch
      %30 = sbr.rel (0) target = $region33
    $region32: #{tpu_custom_call.1} parent=1 // pred_region
      _
    $region33: #{tpu_custom_call.1} parent=1 // pred_fallthru
      _
    // Predicated region
    $region34: #{tpu_custom_call.1} parent=1 // pred_check
      _
    $region35: #{tpu_custom_call.1} parent=1 // pred_check_branch
      %32 = sbr.rel (0) target = $region37
    $region36: #{tpu_custom_call.1} parent=1 // pred_region
      _
    $region37: #{tpu_custom_call.1} parent=1 // pred_fallthru
      _
    %v33 = vld [vmem:[%s0] sm:$0x1]
    %v34 = vld [vmem:[%s1] sm:$0xff]
    %v35 = vld [vmem:[%s1 + $0x8] sm:$0xff]
    %v36 = vld [vmem:[%s1 + $0x10] sm:$0xff]
    %v37 = vld [vmem:[%s1 + $0x18] sm:$0xff]
    %v38 = vld [vmem:[%s1 + $0x20] sm:$0xff]
    %v39 = vld [vmem:[%s1 + $0x28] sm:$0xff]
    %v40 = vld [vmem:[%s1 + $0x30] sm:$0xff]
    %v41 = vld [vmem:[%s1 + $0x38] sm:$0xff]
    %v42 = vld [vmem:[%s1 + $0x40] sm:$0xff]
    %v43 = vld [vmem:[%s1 + $0x48] sm:$0xff]
    %v44 = vld [vmem:[%s1 + $0x50] sm:$0xff]
    %v45 = vld [vmem:[%s1 + $0x58] sm:$0xff]
    %v46 = vld [vmem:[%s1 + $0x60] sm:$0xff]
    %v47 = vld [vmem:[%s1 + $0x68] sm:$0xff]
    %v48 = vld [vmem:[%s1 + $0x70] sm:$0xff]
    %v49 = vld [vmem:[%s1 + $0x78] sm:$0xff]
    %v50 = vld [vmem:[%s2] sm:$0x1]
    %51 = vmatprep.subr.mxu0 0.0
    %52 = vmatpush1.msra.mxu0 %v34
    %53 = vmatprep.subr.mxu0 0.0
    %54 = vmatpush1.msra.mxu0 %v35
    %55 = vmatprep.subr.mxu0 0.0
    %56 = vmatpush1.msra.mxu0 %v36
    %57 = vmatprep.subr.mxu0 0.0
    %58 = vmatpush1.msra.mxu0 %v37
    %59 = vmatprep.subr.mxu0 0.0
    %60 = vmatpush1.msra.mxu0 %v38
    %61 = vmatprep.subr.mxu0 0.0
    %62 = vmatpush1.msra.mxu0 %v39
    %63 = vmatprep.subr.mxu0 0.0
    %64 = vmatpush1.msra.mxu0 %v40
    %65 = vmatprep.subr.mxu0 0.0
    %66 = vmatpush1.msra.mxu0 %v41
    %67 = vmatprep.subr.mxu0 0.0
    %68 = vmatpush1.msra.mxu0 %v42
    %69 = vmatprep.subr.mxu0 0.0
    %70 = vmatpush1.msra.mxu0 %v43
    %71 = vmatprep.subr.mxu0 0.0
    %72 = vmatpush1.msra.mxu0 %v44
    %73 = vmatprep.subr.mxu0 0.0
    %74 = vmatpush1.msra.mxu0 %v45
    %75 = vmatprep.subr.mxu0 0.0
    %76 = vmatpush1.msra.mxu0 %v46
    %77 = vmatprep.subr.mxu0 0.0
    %78 = vmatpush1.msra.mxu0 %v47
    %79 = vmatprep.subr.mxu0 0.0
    %80 = vmatpush1.msra.mxu0 %v48
    %81 = vmatprep.subr.mxu0 0.0
    %82 = vmatpush1.msra.mxu0 %v49
    %83 = vmatprep.subr.mxu0 0.0
    %84 = vmatpush1.msra.mxu0 0.0
    %85 = vmatprep.subr.mxu0 0.0
    %86 = vmatpush1.msra.mxu0 0.0
    %87 = vmatprep.subr.mxu0 0.0
    %88 = vmatpush1.msra.mxu0 0.0
    %89 = vmatprep.subr.mxu0 0.0
    %90 = vmatpush1.msra.mxu0 0.0
    %91 = vmatprep.subr.mxu0 0.0
    %92 = vmatpush1.msra.mxu0 0.0
    %93 = vmatprep.subr.mxu0 0.0
    %94 = vmatpush1.msra.mxu0 0.0
    %95 = vmatprep.subr.mxu0 0.0
    %96 = vmatpush1.msra.mxu0 0.0
    %97 = vmatprep.subr.mxu0 0.0
    %98 = vmatpush1.msra.mxu0 0.0
    %99 = vmatprep.subr.mxu0 0.0
    %100 = vmatpush1.msra.mxu0 0.0
    %101 = vmatprep.subr.mxu0 0.0
    %102 = vmatpush1.msra.mxu0 0.0
    %103 = vmatprep.subr.mxu0 0.0
    %104 = vmatpush1.msra.mxu0 0.0
    %105 = vmatprep.subr.mxu0 0.0
    %106 = vmatpush1.msra.mxu0 0.0
    %107 = vmatprep.subr.mxu0 0.0
    %108 = vmatpush1.msra.mxu0 0.0
    %109 = vmatprep.subr.mxu0 0.0
    %110 = vmatpush1.msra.mxu0 0.0
    %111 = vmatprep.subr.mxu0 0.0
    %112 = vmatpush1.msra.mxu0 0.0
    %113 = vmatprep.subr.mxu0 0.0
    %114 = vmatpush1.msra.mxu0 0.0
    %115 = vmatprep.mubr.f32.mxu0 0.0
    %116 = vmatmul.mubr.f32.gmra.mrb[0].mxu0 %v33
    %v117 = vpop.f32.mrb[0].mxu0
    %v118 = vadd.f32 %v50, %v117
    %v119 = vpop.f32.mrb[0].mxu0
    %120 = vdwg.mxu0
    %v121 = vmul.f32 %v118, 0.01
    %v122 = vmax.f32 %v118, %v121
    %v123 = vld [vmem:[%s3] sm:$0xff]
    %v124 = vld [vmem:[%s3 + $0x8] sm:$0xff]
    %v125 = vld [vmem:[%s3 + $0x10] sm:$0xff]
    %v126 = vld [vmem:[%s3 + $0x18] sm:$0xff]
    %v127 = vld [vmem:[%s3 + $0x20] sm:$0xff]
    %v128 = vld [vmem:[%s3 + $0x28] sm:$0xff]
    %v129 = vld [vmem:[%s3 + $0x30] sm:$0xff]
    %v130 = vld [vmem:[%s3 + $0x38] sm:$0xff]
    %v131 = vld [vmem:[%s3 + $0x40] sm:$0xff]
    %v132 = vld [vmem:[%s4] sm:$0x1]
    %vm133 = vcmask 588800
    %v135 = vsel %vm133, %v122, 0
    %137 = vmatprep.subr.mxu0 0.0
    %138 = vmatpush1.msra.mxu0 %v123
    %139 = vmatprep.subr.mxu0 0.0
    %140 = vmatpush1.msra.mxu0 %v124
    %141 = vmatprep.subr.mxu0 0.0
    %142 = vmatpush1.msra.mxu0 %v125
    %143 = vmatprep.subr.mxu0 0.0
    %144 = vmatpush1.msra.mxu0 %v126
    %145 = vmatprep.subr.mxu0 0.0
    %146 = vmatpush1.msra.mxu0 %v127
    %147 = vmatprep.subr.mxu0 0.0
    %148 = vmatpush1.msra.mxu0 %v128
    %149 = vmatprep.subr.mxu0 0.0
    %150 = vmatpush1.msra.mxu0 %v129
    %151 = vmatprep.subr.mxu0 0.0
    %152 = vmatpush1.msra.mxu0 %v130
    %153 = vmatprep.subr.mxu0 0.0
    %154 = vmatpush1.msra.mxu0 %v131
    %155 = vmatprep.subr.mxu0 0.0
    %156 = vmatpush1.msra.mxu0 0.0
    %157 = vmatprep.subr.mxu0 0.0
    %158 = vmatpush1.msra.mxu0 0.0
    %159 = vmatprep.subr.mxu0 0.0
    %160 = vmatpush1.msra.mxu0 0.0
    %161 = vmatprep.subr.mxu0 0.0
    %162 = vmatpush1.msra.mxu0 0.0
    %163 = vmatprep.subr.mxu0 0.0
    %164 = vmatpush1.msra.mxu0 0.0
    %165 = vmatprep.subr.mxu0 0.0
    %166 = vmatpush1.msra.mxu0 0.0
    %167 = vmatprep.subr.mxu0 0.0
    %168 = vmatpush1.msra.mxu0 0.0
    %169 = vmatprep.subr.mxu0 0.0
    %170 = vmatpush1.msra.mxu0 0.0
    %171 = vmatprep.subr.mxu0 0.0
    %172 = vmatpush1.msra.mxu0 0.0
    %173 = vmatprep.subr.mxu0 0.0
    %174 = vmatpush1.msra.mxu0 0.0
    %175 = vmatprep.subr.mxu0 0.0
    %176 = vmatpush1.msra.mxu0 0.0
    %177 = vmatprep.subr.mxu0 0.0
    %178 = vmatpush1.msra.mxu0 0.0
    %179 = vmatprep.subr.mxu0 0.0
    %180 = vmatpush1.msra.mxu0 0.0
    %181 = vmatprep.subr.mxu0 0.0
    %182 = vmatpush1.msra.mxu0 0.0
    %183 = vmatprep.subr.mxu0 0.0
    %184 = vmatpush1.msra.mxu0 0.0
    %185 = vmatprep.subr.mxu0 0.0
    %186 = vmatpush1.msra.mxu0 0.0
    %187 = vmatprep.subr.mxu0 0.0
    %188 = vmatpush1.msra.mxu0 0.0
    %189 = vmatprep.subr.mxu0 0.0
    %190 = vmatpush1.msra.mxu0 0.0
    %191 = vmatprep.subr.mxu0 0.0
    %192 = vmatpush1.msra.mxu0 0.0
    %193 = vmatprep.subr.mxu0 0.0
    %194 = vmatpush1.msra.mxu0 0.0
    %195 = vmatprep.subr.mxu0 0.0
    %196 = vmatpush1.msra.mxu0 0.0
    %197 = vmatprep.subr.mxu0 0.0
    %198 = vmatpush1.msra.mxu0 0.0
    %199 = vmatprep.subr.mxu0 0.0
    %200 = vmatpush1.msra.mxu0 0.0
    %201 = vmatprep.mubr.f32.mxu0 0.0
    %202 = vmatmul.mubr.f32.gmra.mrb[0].mxu0 %v135
    %v203 = vpop.f32.mrb[0].mxu0
    %v204 = vadd.f32 %v132, %v203
    %v205 = vpop.f32.mrb[0].mxu0
    %206 = vdwg.mxu0
    %v207 = vmul.f32 %v204, 0.01
    %v208 = vmax.f32 %v204, %v207
    %v209 = vld [vmem:[%s5] sm:$0xff]
    %v210 = vld [vmem:[%s5 + $0x8] sm:$0xff]
    %v211 = vld [vmem:[%s5 + $0x10] sm:$0xff]
    %v212 = vld [vmem:[%s5 + $0x18] sm:$0xff]
    %v213 = vld [vmem:[%s6] sm:$0x1]
    %vm214 = vcmask 261120
    %v216 = vsel %vm214, %v208, 0
    %218 = vmatprep.subr.mxu0 0.0
    %219 = vmatpush1.msra.mxu0 %v209
    %220 = vmatprep.subr.mxu0 0.0
    %221 = vmatpush1.msra.mxu0 %v210
    %222 = vmatprep.subr.mxu0 0.0
    %223 = vmatpush1.msra.mxu0 %v211
    %224 = vmatprep.subr.mxu0 0.0
    %225 = vmatpush1.msra.mxu0 %v212
    %226 = vmatprep.subr.mxu0 0.0
    %227 = vmatpush1.msra.mxu0 0.0
    %228 = vmatprep.subr.mxu0 0.0
    %229 = vmatpush1.msra.mxu0 0.0
    %230 = vmatprep.subr.mxu0 0.0
    %231 = vmatpush1.msra.mxu0 0.0
    %232 = vmatprep.subr.mxu0 0.0
    %233 = vmatpush1.msra.mxu0 0.0
    %234 = vmatprep.subr.mxu0 0.0
    %235 = vmatpush1.msra.mxu0 0.0
    %236 = vmatprep.subr.mxu0 0.0
    %237 = vmatpush1.msra.mxu0 0.0
    %238 = vmatprep.subr.mxu0 0.0
    %239 = vmatpush1.msra.mxu0 0.0
    %240 = vmatprep.subr.mxu0 0.0
    %241 = vmatpush1.msra.mxu0 0.0
    %242 = vmatprep.subr.mxu0 0.0
    %243 = vmatpush1.msra.mxu0 0.0
    %244 = vmatprep.subr.mxu0 0.0
    %245 = vmatpush1.msra.mxu0 0.0
    %246 = vmatprep.subr.mxu0 0.0
    %247 = vmatpush1.msra.mxu0 0.0
    %248 = vmatprep.subr.mxu0 0.0
    %249 = vmatpush1.msra.mxu0 0.0
    %250 = vmatprep.subr.mxu0 0.0
    %251 = vmatpush1.msra.mxu0 0.0
    %252 = vmatprep.subr.mxu0 0.0
    %253 = vmatpush1.msra.mxu0 0.0
    %254 = vmatprep.subr.mxu0 0.0
    %255 = vmatpush1.msra.mxu0 0.0
    %256 = vmatprep.subr.mxu0 0.0
    %257 = vmatpush1.msra.mxu0 0.0
    %258 = vmatprep.subr.mxu0 0.0
    %259 = vmatpush1.msra.mxu0 0.0
    %260 = vmatprep.subr.mxu0 0.0
    %261 = vmatpush1.msra.mxu0 0.0
    %262 = vmatprep.subr.mxu0 0.0
    %263 = vmatpush1.msra.mxu0 0.0
    %264 = vmatprep.subr.mxu0 0.0
    %265 = vmatpush1.msra.mxu0 0.0
    %266 = vmatprep.subr.mxu0 0.0
    %267 = vmatpush1.msra.mxu0 0.0
    %268 = vmatprep.subr.mxu0 0.0
    %269 = vmatpush1.msra.mxu0 0.0
    %270 = vmatprep.subr.mxu0 0.0
    %271 = vmatpush1.msra.mxu0 0.0
    %272 = vmatprep.subr.mxu0 0.0
    %273 = vmatpush1.msra.mxu0 0.0
    %274 = vmatprep.subr.mxu0 0.0
    %275 = vmatpush1.msra.mxu0 0.0
    %276 = vmatprep.subr.mxu0 0.0
    %277 = vmatpush1.msra.mxu0 0.0
    %278 = vmatprep.subr.mxu0 0.0
    %279 = vmatpush1.msra.mxu0 0.0
    %280 = vmatprep.subr.mxu0 0.0
    %281 = vmatpush1.msra.mxu0 0.0
    %282 = vmatprep.mubr.f32.mxu0 0.0
    %283 = vmatmul.mubr.f32.gmra.mrb[0].mxu0 %v216
    %v284 = vpop.f32.mrb[0].mxu0
    %v285 = vadd.f32 %v213, %v284
    %v286 = vpop.f32.mrb[0].mxu0
    %287 = vdwg.mxu0
    %v288 = vmul.f32 %v285, 0.01
    %v289 = vmax.f32 %v285, %v288
    %v290 = vld [vmem:[%s7] sm:$0xff]
    %v291 = vld [vmem:[%s7 + $0x8] sm:$0xff]
    %v292 = vld [vmem:[%s7 + $0x10] sm:$0xff]
    %v293 = vld [vmem:[%s7 + $0x18] sm:$0xff]
    %v294 = vld [vmem:[%s7 + $0x20] sm:$0xff]
    %v295 = vld [vmem:[%s7 + $0x28] sm:$0xff]
    %v296 = vld [vmem:[%s7 + $0x30] sm:$0xff]
    %v297 = vld [vmem:[%s7 + $0x38] sm:$0xff]
    %v298 = vld [vmem:[%s7 + $0x40] sm:$0xff]
    %v299 = vld [vmem:[%s8] sm:$0x1]
    %v301 = vsel %vm133, %v289, 0
    %303 = vmatprep.subr.mxu0 0.0
    %304 = vmatpush1.msra.mxu0 %v290
    %305 = vmatprep.subr.mxu0 0.0
    %306 = vmatpush1.msra.mxu0 %v291
    %307 = vmatprep.subr.mxu0 0.0
    %308 = vmatpush1.msra.mxu0 %v292
    %309 = vmatprep.subr.mxu0 0.0
    %310 = vmatpush1.msra.mxu0 %v293
    %311 = vmatprep.subr.mxu0 0.0
    %312 = vmatpush1.msra.mxu0 %v294
    %313 = vmatprep.subr.mxu0 0.0
    %314 = vmatpush1.msra.mxu0 %v295
    %315 = vmatprep.subr.mxu0 0.0
    %316 = vmatpush1.msra.mxu0 %v296
    %317 = vmatprep.subr.mxu0 0.0
    %318 = vmatpush1.msra.mxu0 %v297
    %319 = vmatprep.subr.mxu0 0.0
    %320 = vmatpush1.msra.mxu0 %v298
    %321 = vmatprep.subr.mxu0 0.0
    %322 = vmatpush1.msra.mxu0 0.0
    %323 = vmatprep.subr.mxu0 0.0
    %324 = vmatpush1.msra.mxu0 0.0
    %325 = vmatprep.subr.mxu0 0.0
    %326 = vmatpush1.msra.mxu0 0.0
    %327 = vmatprep.subr.mxu0 0.0
    %328 = vmatpush1.msra.mxu0 0.0
    %329 = vmatprep.subr.mxu0 0.0
    %330 = vmatpush1.msra.mxu0 0.0
    %331 = vmatprep.subr.mxu0 0.0
    %332 = vmatpush1.msra.mxu0 0.0
    %333 = vmatprep.subr.mxu0 0.0
    %334 = vmatpush1.msra.mxu0 0.0
    %335 = vmatprep.subr.mxu0 0.0
    %336 = vmatpush1.msra.mxu0 0.0
    %337 = vmatprep.subr.mxu0 0.0
    %338 = vmatpush1.msra.mxu0 0.0
    %339 = vmatprep.subr.mxu0 0.0
    %340 = vmatpush1.msra.mxu0 0.0
    %341 = vmatprep.subr.mxu0 0.0
    %342 = vmatpush1.msra.mxu0 0.0
    %343 = vmatprep.subr.mxu0 0.0
    %344 = vmatpush1.msra.mxu0 0.0
    %345 = vmatprep.subr.mxu0 0.0
    %346 = vmatpush1.msra.mxu0 0.0
    %347 = vmatprep.subr.mxu0 0.0
    %348 = vmatpush1.msra.mxu0 0.0
    %349 = vmatprep.subr.mxu0 0.0
    %350 = vmatpush1.msra.mxu0 0.0
    %351 = vmatprep.subr.mxu0 0.0
    %352 = vmatpush1.msra.mxu0 0.0
    %353 = vmatprep.subr.mxu0 0.0
    %354 = vmatpush1.msra.mxu0 0.0
    %355 = vmatprep.subr.mxu0 0.0
    %356 = vmatpush1.msra.mxu0 0.0
    %357 = vmatprep.subr.mxu0 0.0
    %358 = vmatpush1.msra.mxu0 0.0
    %359 = vmatprep.subr.mxu0 0.0
    %360 = vmatpush1.msra.mxu0 0.0
    %361 = vmatprep.subr.mxu0 0.0
    %362 = vmatpush1.msra.mxu0 0.0
    %363 = vmatprep.subr.mxu0 0.0
    %364 = vmatpush1.msra.mxu0 0.0
    %365 = vmatprep.subr.mxu0 0.0
    %366 = vmatpush1.msra.mxu0 0.0
    %367 = vmatprep.mubr.f32.mxu0 0.0
    %368 = vmatmul.mubr.f32.gmra.mrb[0].mxu0 %v301
    %v369 = vpop.f32.mrb[0].mxu0
    %v370 = vadd.f32 %v299, %v369
    %v371 = vpop.f32.mrb[0].mxu0
    %372 = vdwg.mxu0
    %v373 = vmul.f32 %v370, 0.01
    %v374 = vmax.f32 %v370, %v373
    %375 = vst [vmem:[#allocation2] sm:$0x1] %v374
    // Predicated region
    $region38: #{tpu_custom_call.1} parent=1 // pred_check
      _
    $region39: #{tpu_custom_call.1} parent=1 // pred_check_branch
      %377 = sbr.rel (0) target = $region41
    $region40: #{tpu_custom_call.1} parent=1 // pred_region
      %s379 = ssub.s32 16, 16
      %380 = vsyncadd [#allocation3], %s379
      %s382 = sshll.u32 [#allocation2], 4
      %s383 = int_to_ptr.vmem [resolvable:$true] %s382
      %385 = dma.vmem_to_hbm [thread:$0]  %s383, 16, %s9, [#allocation3]
    $region41: #{tpu_custom_call.1} parent=1 // pred_fallthru
      _
    // Predicated region
    $region42: #{tpu_custom_call.1} parent=1 // pred_check
      _
    $region43: #{tpu_custom_call.1} parent=1 // pred_check_branch
      %387 = sbr.rel (0) target = $region45
    $region44: #{tpu_custom_call.1} parent=1 // pred_region
      %388 = dma.done [#allocation3], 16
    $region45: #{tpu_custom_call.1} parent=1 // pred_fallthru
      _
    %389 = vsyncpa [#allocation3], 1

</llo_original>
